<compile_context>
chip_gen: v7x
topology: tpu7x:2x2x1
jax: 0.10.0
libtpu: 0.0.40
codegen_flags: <defaults>
</compile_context>

<pallas_src>
import functools

import jax
import jax.numpy as jnp
from jax import lax
from jax.experimental import pallas as pl
from jax.experimental.pallas import tpu as pltpu

_LANE = 128   # lane width
_SUB = 8      # f32 sublanes per vreg
_ALIGN = 16   # row alignment (bf16 native sublane tile)


def _round_up(x, m):
    return -(-x // m) * m


def _cdiv(a, b):
    return -(-a // b)


def _focal_loss_kernel(x_ref, t_ref, o_ref, acc_ref, *, alpha, gamma):
    step = pl.program_id(1)

    # Zero the per-core running accumulator at the start of its row range.
    @pl.when(step == 0)
    def _init():
        acc_ref[...] = jnp.zeros_like(acc_ref)

    x = x_ref[...]                            # (tile_rows, 128) f32 logits
    t = t_ref[...].astype(jnp.float32)        # (tile_rows, 128) bf16 -> f32

    # Numerically-stable BCE with logits (torch formulation):
    #   bce = max(x, 0) - x*t + log1p(exp(-|x|))
    bce = jnp.maximum(x, 0.0) - x * t + jnp.log1p(jnp.exp(-jnp.abs(x)))

    # alpha gather: alpha_table = [alpha, 1 - alpha] indexed by integer target.
    at = jnp.where(t >= 0.5, 1.0 - alpha, alpha)

    pt = jnp.exp(-bce)
    w = 1.0 - pt
    if float(gamma) == int(gamma):
        # Integer exponent (module default gamma=2): multiply chain, no exp/log.
        focal_w = lax.integer_pow(w, int(gamma))
    else:
        focal_w = w ** jnp.float32(gamma)

    # Padded elements (x = -1e9, t = 0) give bce = 0, w = 0 -> contribute 0.
    acc_ref[...] += at * focal_w * bce

    # Final step of this core's row range: reduce and emit the partial block.
    @pl.when(step == pl.num_programs(1) - 1)
    def _finalize():
        col = jnp.sum(acc_ref[...], axis=0, keepdims=True)   # (1, 128)
        o_ref[...] = jnp.zeros_like(o_ref)
        o_ref[0:1, :] = col


def weighted_focal_loss(inputs, targets, alpha=0.25, gamma=2,
                        max_tile_rows=2048, num_cores=2):
    """Pallas TPU forward pass of WeightedFocalLoss. Returns a scalar f32."""
    inputs = jnp.asarray(inputs, jnp.float32).reshape(-1)
    # Targets are {0, 1} (the PyTorch module gathers alpha by targets.long()),
    # so bfloat16 is exact and halves this stream's HBM traffic.
    targets = jnp.asarray(targets).reshape(-1).astype(jnp.bfloat16)
    n = int(inputs.shape[0])

    # Row layout: last dim on the 128-lane axis, rows aligned to bf16 tiles.
    rows = _round_up(_cdiv(n, _LANE), _ALIGN)
    tile_rows = min(int(max_tile_rows),
                    _round_up(_cdiv(rows, num_cores), _ALIGN))
    steps = _cdiv(rows, num_cores * tile_rows)
    rows_padded = num_cores * steps * tile_rows

    pad = rows_padded * _LANE - n
    if pad:
        # Padding value makes the focal term exactly 0 -> no mask stream needed.
        inputs = jnp.pad(inputs, (0, pad), constant_values=-1e9)
        targets = jnp.pad(targets, (0, pad), constant_values=0)

    x2 = inputs.reshape(rows_padded, _LANE)
    t2 = targets.reshape(rows_padded, _LANE)

    kernel = functools.partial(_focal_loss_kernel,
                               alpha=float(alpha), gamma=gamma)

    tile_spec = pl.BlockSpec((tile_rows, _LANE),
                             lambda c, i: (c * steps + i, 0))

    out = pl.pallas_call(
        kernel,
        out_shape=jax.ShapeDtypeStruct((_SUB, _LANE * num_cores), jnp.float32),
        grid_spec=pltpu.PrefetchScalarGridSpec(
            num_scalar_prefetch=0,
            grid=(num_cores, steps),
            in_specs=[tile_spec, tile_spec],
            out_specs=pl.BlockSpec((_SUB, _LANE), lambda c, i: (0, c)),
            scratch_shapes=[pltpu.VMEM((tile_rows, _LANE), jnp.float32)],
        ),
        compiler_params=pltpu.CompilerParams(
            dimension_semantics=("parallel", "arbitrary")),
    )(x2, t2)

    # Combine the per-core partial blocks and divide by the ORIGINAL N.
    return jnp.sum(out) / jnp.float32(n)


def _reference(inputs, targets, alpha=0.25, gamma=2):
    x = inputs.astype(jnp.float32).reshape(-1)
    t = targets.astype(jnp.float32).reshape(-1)
    bce = jnp.maximum(x, 0.0) - x * t + jnp.log1p(jnp.exp(-jnp.abs(x)))
    alpha_tbl = jnp.array([alpha, 1.0 - alpha], jnp.float32)
    at = alpha_tbl[t.astype(jnp.int32)]
    pt = jnp.exp(-bce)
    return jnp.mean(at * (1.0 - pt) ** gamma * bce)


if __name__ == "__main__":
    # Deterministic "parameters": alpha = 0.25, gamma = 2 (module defaults).
    alpha, gamma = 0.25, 2
    key = jax.random.PRNGKey(0)
    k1, k2, k3, k4 = jax.random.split(key, 4)

    # Case 1: small N, deliberately not a multiple of 128, single grid step.
    n1 = 2000
    x1 = jax.random.normal(k1, (n1,), jnp.float32) * 2.0
    t1 = jax.random.bernoulli(k2, 0.3, (n1,)).astype(jnp.float32)
    loss1 = jax.block_until_ready(weighted_focal_loss(x1, t1, alpha, gamma))
    ref1 = _reference(x1, t1, alpha, gamma)
    assert jnp.allclose(loss1, ref1, rtol=5e-5, atol=1e-6), (loss1, ref1)

    # Case 2: larger N with a small tile cap to exercise the multi-step
    # cross-iteration accumulator and multi-tile padding paths.
    n2 = 50000
    x2 = jax.random.normal(k3, (n2,), jnp.float32) * 3.0
    t2 = jax.random.bernoulli(k4, 0.5, (n2,)).astype(jnp.float32)
    loss2 = jax.block_until_ready(
        weighted_focal_loss(x2, t2, alpha, gamma, max_tile_rows=64))
    ref2 = _reference(x2, t2, alpha, gamma)
    assert jnp.allclose(loss2, ref2, rtol=5e-5, atol=1e-6), (loss2, ref2)

    print("KERNEL_OK")
</pallas_src>

<mosaic_0001>
module attributes {stable_mosaic.version = 11 : i64} {
  func.func @_focal_loss_kernel(%arg0: i32, %arg1: i32, %arg2: memref<16x128xf32, #tpu.memory_space<vmem>>, %arg3: memref<16x128xbf16, #tpu.memory_space<vmem>>, %arg4: memref<8x128xf32, #tpu.memory_space<vmem>>, %arg5: memref<16x128xf32, #tpu.memory_space<vmem>>) attributes {dimension_semantics = [#tpu.dimension_semantics<parallel>, #tpu.dimension_semantics<arbitrary>], iteration_bounds = array<i64: 2, 1>, scalar_prefetch = 0 : i64, scratch_operands = 1 : i64, tpu.core_type = #tpu.core_type<tc>, window_params = [{transform_indices = @transform_0, window_bounds = array<i64: 16, 128>}, {transform_indices = @transform_1, window_bounds = array<i64: 16, 128>}, {transform_indices = @transform_2, window_bounds = array<i64: 8, 128>}]} {
    %c0_i32 = arith.constant 0 : i32
    %0 = arith.cmpi eq, %arg1, %c0_i32 : i32
    %1 = arith.extui %0 : i1 to i32
    %c0_i32_0 = arith.constant 0 : i32
    %2 = arith.cmpi ne, %1, %c0_i32_0 : i32
    scf.if %2 {
      %cst_16 = arith.constant 0.000000e+00 : f32
      %35 = vector.broadcast %cst_16 : f32 to vector<16x128xf32>
      %c0_17 = arith.constant 0 : index
      %c0_18 = arith.constant 0 : index
      %36 = vector.load %arg5[%c0_17, %c0_18] : memref<16x128xf32, #tpu.memory_space<vmem>>, vector<16x128xf32>
      tpu.vector_store %arg5[%c0_17, %c0_18], %35 {strides = array<i32>} : memref<16x128xf32, #tpu.memory_space<vmem>>, vector<16x128xf32>,
    } else {
    }
    %c0 = arith.constant 0 : index
    %c0_1 = arith.constant 0 : index
    %3 = vector.load %arg2[%c0, %c0_1] : memref<16x128xf32, #tpu.memory_space<vmem>>, vector<16x128xf32>
    %c0_2 = arith.constant 0 : index
    %c0_3 = arith.constant 0 : index
    %4 = vector.load %arg3[%c0_2, %c0_3] : memref<16x128xbf16, #tpu.memory_space<vmem>>, vector<16x128xbf16>
    %5 = arith.extf %4 : vector<16x128xbf16> to vector<16x128xf32>
    %cst = arith.constant 0.000000e+00 : f32
    %6 = vector.broadcast %cst : f32 to vector<16x128xf32>
    %7 = arith.maximumf %3, %6 : vector<16x128xf32>
    %8 = arith.mulf %3, %5 : vector<16x128xf32>
    %9 = arith.subf %7, %8 : vector<16x128xf32>
    %10 = math.absf %3 : vector<16x128xf32>
    %cst_4 = arith.constant 0.000000e+00 : f32
    %11 = vector.broadcast %cst_4 : f32 to vector<16x128xf32>
    %12 = arith.subf %11, %10 : vector<16x128xf32>
    %13 = math.exp %12 : vector<16x128xf32>
    %14 = math.log1p %13 : vector<16x128xf32>
    %15 = arith.addf %9, %14 : vector<16x128xf32>
    %cst_5 = arith.constant 5.000000e-01 : f32
    %16 = vector.broadcast %cst_5 : f32 to vector<16x128xf32>
    %17 = arith.cmpf oge, %5, %16 : vector<16x128xf32>
    %cst_6 = arith.constant 7.500000e-01 : f32
    %cst_7 = arith.constant 2.500000e-01 : f32
    %18 = vector.broadcast %cst_6 : f32 to vector<16x128xf32>
    %19 = vector.broadcast %cst_7 : f32 to vector<16x128xf32>
    %20 = arith.select %17, %18, %19 : vector<16x128xi1>, vector<16x128xf32>
    %cst_8 = arith.constant 0.000000e+00 : f32
    %21 = vector.broadcast %cst_8 : f32 to vector<16x128xf32>
    %22 = arith.subf %21, %15 : vector<16x128xf32>
    %23 = math.exp %22 : vector<16x128xf32>
    %cst_9 = arith.constant 1.000000e+00 : f32
    %24 = vector.broadcast %cst_9 : f32 to vector<16x128xf32>
    %25 = arith.subf %24, %23 : vector<16x128xf32>
    %26 = arith.mulf %25, %25 : vector<16x128xf32>
    %c0_10 = arith.constant 0 : index
    %c0_11 = arith.constant 0 : index
    %27 = vector.load %arg5[%c0_10, %c0_11] : memref<16x128xf32, #tpu.memory_space<vmem>>, vector<16x128xf32>
    %28 = arith.mulf %20, %26 : vector<16x128xf32>
    %29 = arith.mulf %28, %15 : vector<16x128xf32>
    %30 = arith.addf %27, %29 : vector<16x128xf32>
    %c0_12 = arith.constant 0 : index
    %c0_13 = arith.constant 0 : index
    %31 = vector.load %arg5[%c0_12, %c0_13] : memref<16x128xf32, #tpu.memory_space<vmem>>, vector<16x128xf32>
    tpu.vector_store %arg5[%c0_12, %c0_13], %30 {strides = array<i32>} : memref<16x128xf32, #tpu.memory_space<vmem>>, vector<16x128xf32>,
    %c0_i32_14 = arith.constant 0 : i32
    %32 = arith.cmpi eq, %arg1, %c0_i32_14 : i32
    %33 = arith.extui %32 : i1 to i32
    %c0_i32_15 = arith.constant 0 : i32
    %34 = arith.cmpi ne, %33, %c0_i32_15 : i32
    scf.if %34 {
      %c0_16 = arith.constant 0 : index
      %c0_17 = arith.constant 0 : index
      %35 = vector.load %arg5[%c0_16, %c0_17] : memref<16x128xf32, #tpu.memory_space<vmem>>, vector<16x128xf32>
      %cst_18 = arith.constant dense<0.000000e+00> : vector<128xf32>
      %36 = vector.multi_reduction <add>, %35, %cst_18 [0] : vector<16x128xf32> to vector<128xf32>
      %37 = vector.shape_cast %36 : vector<128xf32> to vector<1x128xf32>
      %cst_19 = arith.constant 0.000000e+00 : f32
      %38 = vector.broadcast %cst_19 : f32 to vector<8x128xf32>
      %c0_20 = arith.constant 0 : index
      %c0_21 = arith.constant 0 : index
      %39 = vector.load %arg4[%c0_20, %c0_21] : memref<8x128xf32, #tpu.memory_space<vmem>>, vector<8x128xf32>
      tpu.vector_store %arg4[%c0_20, %c0_21], %38 {strides = array<i32>} : memref<8x128xf32, #tpu.memory_space<vmem>>, vector<8x128xf32>,
      %c0_22 = arith.constant 0 : index
      %c0_23 = arith.constant 0 : index
      %40 = vector.load %arg4[%c0_22, %c0_23] : memref<8x128xf32, #tpu.memory_space<vmem>>, vector<1x128xf32>
      tpu.vector_store %arg4[%c0_22, %c0_23], %37 {strides = array<i32>} : memref<8x128xf32, #tpu.memory_space<vmem>>, vector<1x128xf32>,
    } else {
    }
    return
  }
  func.func @transform_0(%arg0: i32, %arg1: i32) -> (i32, i32) {
    %c1_i32 = arith.constant 1 : i32
    %0 = arith.muli %arg0, %c1_i32 : i32
    %1 = arith.addi %0, %arg1 : i32
    %c0_i32 = arith.constant 0 : i32
    %c0_i32_0 = arith.constant 0 : i32
    return %1, %c0_i32 : i32, i32
  }
  func.func @transform_1(%arg0: i32, %arg1: i32) -> (i32, i32) {
    %c1_i32 = arith.constant 1 : i32
    %0 = arith.muli %arg0, %c1_i32 : i32
    %1 = arith.addi %0, %arg1 : i32
    %c0_i32 = arith.constant 0 : i32
    %c0_i32_0 = arith.constant 0 : i32
    return %1, %c0_i32 : i32, i32
  }
  func.func @transform_2(%arg0: i32, %arg1: i32) -> (i32, i32) {
    %c0_i32 = arith.constant 0 : i32
    %c0_i32_0 = arith.constant 0 : i32
    return %c0_i32, %arg0 : i32, i32
  }
}

</mosaic_0001>

<llo_original>
// kernel: tpu_custom_call.1
$region0: #{tpu_custom_call.1}
  #allocation0 [shape = 'u32[]', space=smem, size = 0x4, offset = 0x4, fixed_abs, tag = 'smem constant byte address 0x4 - core index']
  #allocation1 [shape = 'u32[144,128]{1,0:T(1,128)}', space=vmem, size = 0x12000, scoped, tag = 'internal scratch']
  #allocation2 [shape = 'f32[16,128]{1,0:T(8,128)}', space=vmem, size = 0x2000, scoped, tag = 'scratch operand']
  %s0 = inlined_call_operand.hbm [shape: f32[32,128], index: 0, kind: input, shape index: {}]
  %s1 = inlined_call_operand.hbm [shape: bf16[32,128], index: 1, kind: input, shape index: {}]
  %s2 = inlined_call_operand.hbm [shape: f32[8,256], index: 2, kind: output, shape index: {}]
  %s3 = sld [smem:[#allocation0]]
  $region57: #{tpu_custom_call.1} parent=0
    _
  %s5 = ssub.s32 1, %s3
  %s6 = scalar_select 0, %s5, %s3
  $region1: #{tpu_custom_call.1} parent=0
    #allocation3 [shape = 'u8[16384]{0}', space=vmem, size = 0x4000, scoped, tag = 'input window, operand 0']
    #allocation4 [shape = 's32[2]{0}', space=sflag, size = 0x8, scoped, tag = 'scoped memory for tpu_custom_call.1']
    #allocation5 [shape = 's32[2]{0}', space=sflag, size = 0x8, scoped, tag = 'scoped memory for tpu_custom_call.1']
    #allocation6 [shape = 'u8[8192]{0}', space=vmem, size = 0x2000, scoped, tag = 'input window, operand 1']
    #allocation7 [shape = 's32[2]{0}', space=sflag, size = 0x8, scoped, tag = 'scoped memory for tpu_custom_call.1']
    #allocation8 [shape = 'u8[8192]{0}', space=vmem, size = 0x2000, scoped, tag = 'output window, operand 0']
    %7 = vsyncpa [#allocation4], 0
    %s8 = scalar_lea.sflag [#allocation4], 1
    %9 = vsyncpa %s8, 0
    %10 = vsyncpa [#allocation7], 0
    %s11 = scalar_lea.sflag [#allocation7], 1
    %12 = vsyncpa %s11, 0
    %13 = vsyncpa [#allocation5], 0
    %s14 = scalar_lea.sflag [#allocation5], 1
    %15 = vsyncpa %s14, 0
    loop: start=0, step=1, limit=4
    $region2: #{tpu_custom_call.1} parent=1 // loop_pre_header
      _
    $region3: #{tpu_custom_call.1} parent=1 // loop_header
      %s17 = sphi 0, %s21
      %p18 = scmp.ge.s32.totalorder %s17, 4
      %s24 = sphi 0, %s36
      %s25 = sphi 0, %s32
      %s26 = sphi 0, %s24
      %s27 = sphi 0, %s25
      %s28 = sphi 0, %s26
      %s29 = sphi 0, %s27
      %s41 = sphi 0, %s43
      %s44 = sphi 0, %s41
      %s45 = sphi 0, %s44
      %s61 = sphi 0, %s45
      %s69 = sphi 0, %s71
      %s72 = sphi 0, %s69
      %s73 = sphi 0, %s72
      %s89 = sphi 0, %s73
      %s95 = sphi 0, %s97
      %s98 = sphi 0, %s95
      %s99 = sphi 0, %s98
      %s115 = sphi 0, %s99
    $region4: #{tpu_custom_call.1} parent=1 // loop_header_branch
      %20 = sbr.rel (%p18) target = $region8
    $region5: #{tpu_custom_call.1} parent=1 // loop_body
      %s22 = ssub.s32 %s17, 1
      %s23 = ssub.s32 %s17, 2
      %s30 = sadd.s32 1, %s25
      %p31 = scmp.ge.s32.totalorder %s30, 1
      %s32 = scalar_select %p31, 0, %s30
      %s33 = sadd.s32 1, %s24
      %s34 = scalar_select %p31, %s33, %s24
      %p35 = scmp.ge.s32.totalorder %s34, 2
      %s36 = scalar_select %p35, 0, %s34
      %s37 = sadd.s32 %s24, %s25
      %s38 = sadd.s32 %s36, %s32
      %s39 = ssub.s32 %s37, %s38
      %p40 = scmp.eq.s32.totalorder %s39, 0
      %s42 = sadd.s32 %s41, 1
      %s43 = scalar_select %p40, %s41, %s42
      %p46 = pneg %p40
      %p47 = scmp.eq.s32.totalorder %s17, 1
      %p48 = por %p46, %p47
      %p49 = scmp.ne.s32.totalorder %s41, %s44
      %p50 = scmp.eq.s32.totalorder %s17, 0
      %p51 = por %p49, %p50
      %p52 = scmp.ne.s32.totalorder %s41, %s44
      %p53 = scmp.eq.s32.totalorder %s22, 1
      %p54 = por %p52, %p53
      %p55 = scmp.ne.s32.totalorder %s44, %s45
      %p56 = scmp.eq.s32.totalorder %s22, 0
      %p57 = por %p55, %p56
      %p58 = scmp.ne.s32.totalorder %s44, %s45
      %p59 = scmp.eq.s32.totalorder %s23, 1
      %p60 = por %p58, %p59
      %p62 = scmp.ne.s32.totalorder %s45, %s61
      %p63 = scmp.eq.s32.totalorder %s23, 0
      %p64 = por %p62, %p63
      %s65 = sadd.s32 %s24, %s25
      %s66 = sadd.s32 %s36, %s32
      %s67 = ssub.s32 %s65, %s66
      %p68 = scmp.eq.s32.totalorder %s67, 0
      %s70 = sadd.s32 %s69, 1
      %s71 = scalar_select %p68, %s69, %s70
      %p74 = pneg %p68
      %p75 = scmp.eq.s32.totalorder %s17, 1
      %p76 = por %p74, %p75
      %p77 = scmp.ne.s32.totalorder %s69, %s72
      %p78 = scmp.eq.s32.totalorder %s17, 0
      %p79 = por %p77, %p78
      %p80 = scmp.ne.s32.totalorder %s69, %s72
      %p81 = scmp.eq.s32.totalorder %s22, 1
      %p82 = por %p80, %p81
      %p83 = scmp.ne.s32.totalorder %s72, %s73
      %p84 = scmp.eq.s32.totalorder %s22, 0
      %p85 = por %p83, %p84
      %p86 = scmp.ne.s32.totalorder %s72, %s73
      %p87 = scmp.eq.s32.totalorder %s23, 1
      %p88 = por %p86, %p87
      %p90 = scmp.ne.s32.totalorder %s73, %s89
      %p91 = scmp.eq.s32.totalorder %s23, 0
      %p92 = por %p90, %p91
      %s93 = ssub.s32 %s24, %s36
      %p94 = scmp.eq.s32.totalorder %s93, 0
      %s96 = sadd.s32 %s95, 1
      %s97 = scalar_select %p94, %s95, %s96
      %p100 = pneg %p94
      %p101 = scmp.eq.s32.totalorder %s17, 1
      %p102 = por %p100, %p101
      %p103 = scmp.ne.s32.totalorder %s95, %s98
      %p104 = scmp.eq.s32.totalorder %s17, 0
      %p105 = por %p103, %p104
      %p106 = scmp.ne.s32.totalorder %s95, %s98
      %p107 = scmp.eq.s32.totalorder %s22, 1
      %p108 = por %p106, %p107
      %p109 = scmp.ne.s32.totalorder %s98, %s99
      %p110 = scmp.eq.s32.totalorder %s22, 0
      %p111 = por %p109, %p110
      %p112 = scmp.ne.s32.totalorder %s98, %s99
      %p113 = scmp.eq.s32.totalorder %s23, 1
      %p114 = por %p112, %p113
      %p116 = scmp.ne.s32.totalorder %s99, %s115
      %p117 = scmp.eq.s32.totalorder %s23, 0
      %p118 = por %p116, %p117
      %p119 = scmp.le.s32.totalorder 1, %s17
      %p120 = scmp.lt.s32.totalorder %s17, 3
      %p121 = pnand %p119, %p120
      %p122 = pneg %p121
      // Predicated region
      $region9: #{tpu_custom_call.1} parent=5 // pred_check
        _
      $region10: #{tpu_custom_call.1} parent=5 // pred_check_branch
        %124 = sbr.rel (%p121) target = $region12
      $region11: #{tpu_custom_call.1} parent=5 // pred_region
        %s125 = ssub.s32 %s17, 1
      $region12: #{tpu_custom_call.1} parent=5 // pred_fallthru
        _
      %p126 = scmp.lt.s32.totalorder %s17, 2
      // Predicated region
      $region13: #{tpu_custom_call.1} parent=5 // pred_check
        %p127 = pneg %p126
      $region14: #{tpu_custom_call.1} parent=5 // pred_check_branch
        %129 = sbr.rel (%p127) target = $region16
      $region15: #{tpu_custom_call.1} parent=5 // pred_region
        // Predicated region
        $region17: #{tpu_custom_call.1} parent=15 // pred_check
          %p130 = pneg %p51
        $region18: #{tpu_custom_call.1} parent=15 // pred_check_branch
          %132 = sbr.rel (%p130) target = $region20
        $region19: #{tpu_custom_call.1} parent=15 // pred_region
          %s133 = sand.u32 %s41, 1
          %s134 = scalar_lea.sflag [#allocation4], %s133
          %s135 = sand.u32 %s41, 1
          %s136 = smul.addr %s135, 16
          %s137 = scalar_lea.vmem [#allocation3], %s136
          %s138 = sadd.s32 %s24, %s25
          %s139 = smul.u32 2, %s138
          %s141 = ssub.s32 256, 256
          %142 = vsyncadd %s134, %s141
          %s143 = smul.addr %s139, 128
          %s144 = scalar_lea.hbm %s0, %s143
          %s145 = sshll.u32 %s137, 4
          %s146 = int_to_ptr.vmem [resolvable:$true] %s145
          %151 = dma.hbm_to_vmem [thread:$0]  %s144, 256, %s146, %s134, 128, 128, 8
        $region20: #{tpu_custom_call.1} parent=15 // pred_fallthru
          _
        // Predicated region
        $region21: #{tpu_custom_call.1} parent=15 // pred_check
          %p152 = pneg %p79
        $region22: #{tpu_custom_call.1} parent=15 // pred_check_branch
          %154 = sbr.rel (%p152) target = $region24
        $region23: #{tpu_custom_call.1} parent=15 // pred_region
          %s155 = sand.u32 %s69, 1
          %s156 = scalar_lea.sflag [#allocation7], %s155
          %s157 = sand.u32 %s69, 1
          %s158 = smul.addr %s157, 8
          %s159 = scalar_lea.vmem [#allocation6], %s158
          %s160 = sadd.s32 %s24, %s25
          %s161 = smul.u32 2, %s160
          %s163 = ssub.s32 128, 128
          %164 = vsyncadd %s156, %s163
          %s165 = smul.addr %s161, 64
          %s166 = scalar_lea.hbm %s1, %s165
          %s167 = sshll.u32 %s159, 4
          %s168 = int_to_ptr.vmem [resolvable:$true] %s167
          %173 = dma.hbm_to_vmem [thread:$0]  %s166, 128, %s168, %s156, 64, 64, 4
        $region24: #{tpu_custom_call.1} parent=15 // pred_fallthru
          _
      $region16: #{tpu_custom_call.1} parent=5 // pred_fallthru
        _
      %p174 = scmp.le.s32.totalorder 1, %s17
      %p175 = scmp.lt.s32.totalorder %s17, 3
      %p176 = pnand %p174, %p175
      %p177 = pneg %p176
      // Predicated region
      $region25: #{tpu_custom_call.1} parent=5 // pred_check
        _
      $region26: #{tpu_custom_call.1} parent=5 // pred_check_branch
        %179 = sbr.rel (%p176) target = $region28
      $region27: #{tpu_custom_call.1} parent=5 // pred_region
        %s180 = ssub.s32 %s17, 1
        %s181 = sand.u32 %s44, 1
        %s182 = scalar_lea.sflag [#allocation4], %s181
        %s183 = sand.u32 %s44, 1
        %s184 = smul.addr %s183, 16
        %s185 = scalar_lea.vmem [#allocation3], %s184
        // Predicated region
        $region29: #{tpu_custom_call.1} parent=27 // pred_check
          %p186 = pneg %p57
        $region30: #{tpu_custom_call.1} parent=27 // pred_check_branch
          %188 = sbr.rel (%p186) target = $region32
        $region31: #{tpu_custom_call.1} parent=27 // pred_region
          %189 = dma.done %s182, 256
        $region32: #{tpu_custom_call.1} parent=27 // pred_fallthru
          _
        %s190 = sand.u32 %s72, 1
        %s191 = scalar_lea.sflag [#allocation7], %s190
        %s192 = sand.u32 %s72, 1
        %s193 = smul.addr %s192, 8
        %s194 = scalar_lea.vmem [#allocation6], %s193
        // Predicated region
        $region33: #{tpu_custom_call.1} parent=27 // pred_check
          %p195 = pneg %p85
        $region34: #{tpu_custom_call.1} parent=27 // pred_check_branch
          %197 = sbr.rel (%p195) target = $region36
        $region35: #{tpu_custom_call.1} parent=27 // pred_region
          %198 = dma.done %s191, 128
        $region36: #{tpu_custom_call.1} parent=27 // pred_fallthru
          _
        %s199 = sand.u32 %s44, 1
        %s200 = scalar_lea.sflag [#allocation4], %s199
        %s201 = sand.u32 %s44, 1
        %s202 = smul.addr %s201, 16
        %s203 = scalar_lea.vmem [#allocation3], %s202
        %p204 = pneg %p57
        %p205 = pneg %p54
        %s206 = sand.u32 %s72, 1
        %s207 = scalar_lea.sflag [#allocation7], %s206
        %s208 = sand.u32 %s72, 1
        %s209 = smul.addr %s208, 8
        %s210 = scalar_lea.vmem [#allocation6], %s209
        %p211 = pneg %p85
        %p212 = pneg %p82
        %p213 = pneg %p111
        %p214 = pneg %p108
        %s215 = sand.u32 %s98, 1
        %s216 = scalar_lea.sflag [#allocation5], %s215
        %s217 = sand.u32 %s98, 1
        %s218 = smul.addr %s217, 8
        %s219 = scalar_lea.vmem [#allocation8], %s218
        %s220 = sadd.s32 %s26, %s27
        %s221 = smul.u32 2, %s220
        %s222 = sadd.s32 %s26, %s27
        %s223 = smul.u32 2, %s222
        %p224 = scmp.eq.s32.totalorder %s27, 0
        // Predicated region
        $region37: #{tpu_custom_call.1} parent=27 // pred_check
          %p225 = pneg %p224
        $region38: #{tpu_custom_call.1} parent=27 // pred_check_branch
          %227 = sbr.rel (%p225) target = $region40
        $region39: #{tpu_custom_call.1} parent=27 // pred_region
          %228 = vst [vmem:[#allocation2] sm:$0xff] 0.0
          %229 = vst [vmem:[#allocation2 + $0x8] sm:$0xff] 0.0
        $region40: #{tpu_custom_call.1} parent=27 // pred_fallthru
          _
        %v230 = vld [vmem:[%s185] sm:$0xff]
        %v231 = vld [vmem:[%s185 + $0x8] sm:$0xff]
        %v232 = vld [vmem:[%s194] sm:$0xf]
        %v233 = vld [vmem:[%s194 + $0x4] sm:$0xf]
        %v234 = vunpack.c.l.bf16 %v232
        %v235 = vunpack.c.l.bf16 %v233
        %v236 = vmax.f32 %v230, 0.0
        %v237 = vmax.f32 %v231, 0.0
        %v238 = vmul.f32 %v230, %v234
        %v239 = vmul.f32 %v231, %v235
        %v240 = vsub.f32 %v236, %v238
        %v241 = vsub.f32 %v237, %v239
        %v242 = vand.u32 2147483647, %v230
        %v243 = vand.u32 2147483647, %v231
        %v244 = vsub.f32 0.0, %v242
        %v245 = vsub.f32 0.0, %v243
        %v246 = vmul.f32 %v244, 1.442695
        %v247 = vpow.pop %v246
        %v248 = vmul.f32 %v245, 1.442695
        %v249 = vpow.pop %v248
        %v250 = vadd.f32 %v247, 1.0
        %v251 = vlog2.pop %v250
        %v252 = vmul.f32 %v251, 0.6931472
        %v253 = vmul.f32 -0.5, %v247
        %v254 = vadd.f32 %v253, 1.0
        %v255 = vmul.f32 %v254, %v247
        %v256 = vand.u32 2147483647, %v247
        %vm257 = vcmp.lt.f32.partialorder %v256, 0.0004427343
        %v258 = vsel %vm257, %v255, %v252
        %v259 = vadd.f32 %v249, 1.0
        %v260 = vlog2.pop %v259
        %v261 = vmul.f32 %v260, 0.6931472
        %v262 = vmul.f32 -0.5, %v249
        %v263 = vadd.f32 %v262, 1.0
        %v264 = vmul.f32 %v263, %v249
        %v265 = vand.u32 2147483647, %v249
        %vm266 = vcmp.lt.f32.partialorder %v265, 0.0004427343
        %v267 = vsel %vm266, %v264, %v261
        %v268 = vadd.f32 %v240, %v258
        %v269 = vadd.f32 %v241, %v267
        %vm270 = vcmp.ge.f32.partialorder %v234, 0.5
        %vm271 = vcmp.ge.f32.partialorder %v235, 0.5
        %v272 = vsel %vm270, 0.75, 0.25
        %v273 = vsel %vm271, 0.75, 0.25
        %v274 = vsub.f32 0.0, %v268
        %v275 = vsub.f32 0.0, %v269
        %v276 = vmul.f32 %v274, 1.442695
        %v277 = vpow.pop %v276
        %v278 = vmul.f32 %v275, 1.442695
        %v279 = vpow.pop %v278
        %v280 = vsub.f32 1.0, %v277
        %v281 = vsub.f32 1.0, %v279
        %v282 = vmul.f32 %v280, %v280
        %v283 = vmul.f32 %v281, %v281
        %v284 = vld [vmem:[#allocation2] sm:$0xff]
        %v285 = vld [vmem:[#allocation2 + $0x8] sm:$0xff]
        %v286 = vmul.f32 %v272, %v282
        %v287 = vmul.f32 %v273, %v283
        %v288 = vmul.f32 %v286, %v268
        %v289 = vmul.f32 %v287, %v269
        %v290 = vadd.f32 %v284, %v288
        %v291 = vadd.f32 %v285, %v289
        %292 = vst [vmem:[#allocation2] sm:$0xff] %v290
        %293 = vst [vmem:[#allocation2 + $0x8] sm:$0xff] %v291
        // Predicated region
        $region41: #{tpu_custom_call.1} parent=27 // pred_check
          %p294 = pneg %p224
        $region42: #{tpu_custom_call.1} parent=27 // pred_check_branch
          %296 = sbr.rel (%p294) target = $region44
        $region43: #{tpu_custom_call.1} parent=27 // pred_region
          %v297 = vld [vmem:[#allocation2] sm:$0xff]
          %v298 = vld [vmem:[#allocation2 + $0x8] sm:$0xff]
          %v299 = vadd.f32 %v297, %v298
          %v300 = vrot.slane %v299, 4
          %v301 = vadd.f32 %v299, %v300
          %v302 = vrot.slane %v301, 2
          %v303 = vadd.f32 %v301, %v302
          %v304 = vrot.slane %v303, 1
          %v305 = vadd.f32 %v303, %v304
          %306 = vst [vmem:[%s219] sm:$0xff] 0.0
          %307 = vst [vmem:[%s219] sm:$0x1] %v305
        $region44: #{tpu_custom_call.1} parent=27 // pred_fallthru
          _
        %s308 = sand.u32 %s98, 1
        %s309 = scalar_lea.sflag [#allocation5], %s308
        %s310 = sand.u32 %s98, 1
        %s311 = smul.addr %s310, 8
        %s312 = scalar_lea.vmem [#allocation8], %s311
        // Predicated region
        $region45: #{tpu_custom_call.1} parent=27 // pred_check
          %p313 = pneg %p108
        $region46: #{tpu_custom_call.1} parent=27 // pred_check_branch
          %315 = sbr.rel (%p313) target = $region48
        $region47: #{tpu_custom_call.1} parent=27 // pred_region
          %s317 = ssub.s32 128, 128
          %318 = vsyncadd %s309, %s317
          %s319 = smul.addr %s26, 128
          %s320 = scalar_lea.hbm %s2, %s319
          %s322 = sshll.u32 %s312, 4
          %s323 = int_to_ptr.vmem [resolvable:$true] %s322
          %325 = dma.vmem_to_hbm [thread:$0]  %s323, 128, %s320, %s309
        $region48: #{tpu_custom_call.1} parent=27 // pred_fallthru
          _
      $region28: #{tpu_custom_call.1} parent=5 // pred_fallthru
        _
      %p326 = scmp.le.s32.totalorder 2, %s17
      // Predicated region
      $region49: #{tpu_custom_call.1} parent=5 // pred_check
        %p327 = pneg %p326
      $region50: #{tpu_custom_call.1} parent=5 // pred_check_branch
        %329 = sbr.rel (%p327) target = $region52
      $region51: #{tpu_custom_call.1} parent=5 // pred_region
        %s330 = ssub.s32 %s17, 2
        // Predicated region
        $region53: #{tpu_custom_call.1} parent=51 // pred_check
          %p331 = pneg %p114
        $region54: #{tpu_custom_call.1} parent=51 // pred_check_branch
          %333 = sbr.rel (%p331) target = $region56
        $region55: #{tpu_custom_call.1} parent=51 // pred_region
          %s334 = sand.u32 %s99, 1
          %s335 = scalar_lea.sflag [#allocation5], %s334
          %s336 = sand.u32 %s99, 1
          %s337 = smul.addr %s336, 8
          %s338 = scalar_lea.vmem [#allocation8], %s337
          %339 = dma.done %s335, 128
        $region56: #{tpu_custom_call.1} parent=51 // pred_fallthru
          _
      $region52: #{tpu_custom_call.1} parent=5 // pred_fallthru
        _
    $region6: #{tpu_custom_call.1} parent=1 // loop_footer
      %s21 = sadd.s32 1, %s17
    $region7: #{tpu_custom_call.1} parent=1 // loop_footer_branch
      %16 = sbr.rel target = $region3
    $region8: #{tpu_custom_call.1} parent=1 // loop_exit
      _
    %340 = vsyncpa [#allocation4], 1
    %s341 = scalar_lea.sflag [#allocation4], 1
    %342 = vsyncpa %s341, 1
    %343 = vsyncpa [#allocation7], 1
    %s344 = scalar_lea.sflag [#allocation7], 1
    %345 = vsyncpa %s344, 1
    %346 = vsyncpa [#allocation5], 1
    %s347 = scalar_lea.sflag [#allocation5], 1
    %348 = vsyncpa %s347, 1

</llo_original>
